<compile_context>
chip_gen: v7x
topology: tpu7x:2x2x1
jax: 0.10.0
libtpu: 0.0.40
codegen_flags: <defaults>
</compile_context>

<pallas_src>
import functools

import jax
import jax.numpy as jnp
from jax.experimental import pallas as pl
from jax.experimental.pallas import tpu as pltpu

LANES = 128
MAX_ROW_BLK = 8192                     # 8192*128*4B = 4 MiB / input / step
VMEM_LIMIT_BYTES = 40 * 1024 * 1024    # inputs double-buffered ~16 MiB + slack
EPS = 1e-6


def _num_splits():
    """2 only on chips where one Pallas program spans two TensorCores."""
    try:
        kind = jax.devices()[0].device_kind.lower()
    except Exception:
        return 1
    return 2 if any(t in kind for t in ("v4", "v5p", "v7", "7x")) else 1


def _partial_sums_kernel(logits_ref, labels_ref, out_ref, acc_ref, *,
                         row_blk, steps, n_valid, sub, exact):
    c = pl.program_id(0)   # parallel split (a TensorCore on dual-TC chips)
    i = pl.program_id(1)   # reduction step within the split

    @pl.when(i == 0)
    def _():
        acc_ref[...] = jnp.zeros_like(acc_ref)

    x = logits_ref[...].astype(jnp.float32)
    y = labels_ref[...]            # native dtype; only ==0 / ==1 tests used

    def rsum(v):                   # (row_blk,128) -> (sub,128); pure vreg adds
        if sub == 8:
            return jnp.sum(v.reshape(-1, 8, LANES), axis=0)
        return jnp.sum(v, axis=0, keepdims=True)

    def accumulate(valid):
        pred_pos = x >= 0.0        # == (sigmoid(x) >= 0.5) without exp/recip
        is_pos = y == 1
        is_zero = y == 0
        if valid is not None:
            is_pos = jnp.logical_and(is_pos, valid)
            is_zero = jnp.logical_and(is_zero, valid)
        pos_f = is_pos.astype(jnp.float32)
        neg_f = is_zero.astype(jnp.float32)
        # softplus(x) = max(x,0) + log1p(exp(-|x|)); BCE(y=0)=sp, BCE(y=1)=sp-x
        sp = jnp.maximum(x, 0.0) + jnp.log1p(jnp.exp(-jnp.abs(x)))
        # TODO(synk): on v7x these six row sums could ride the idle MXU via a
        # ones-vector matmul; kept on the VPU for portability.
        acc_ref[0 * sub:1 * sub, :] += rsum(jnp.where(pred_pos, pos_f, 0.0))  # tp
        acc_ref[1 * sub:2 * sub, :] += rsum(jnp.where(pred_pos, neg_f, 0.0))  # fp
        acc_ref[2 * sub:3 * sub, :] += rsum(pos_f)                            # #pos
        acc_ref[3 * sub:4 * sub, :] += rsum(neg_f)                            # #neg
        acc_ref[4 * sub:5 * sub, :] += rsum(jnp.where(is_pos, sp - x, 0.0))   # BCE|y=1
        acc_ref[5 * sub:6 * sub, :] += rsum(jnp.where(is_zero, sp, 0.0))      # BCE|y=0

    if exact:
        # Grid covers exactly n_valid elements: no masking code emitted at all.
        accumulate(None)
    else:
        blk_elems = row_blk * LANES
        elem_start = (c * steps + i) * blk_elems
        elems_left = n_valid - elem_start       # int32 scalar (< 2^31 elems)

        @pl.when(elems_left >= blk_elems)       # interior block: fast path
        def _():
            accumulate(None)

        @pl.when(elems_left < blk_elems)        # boundary / clamped overrun
        def _():
            row_ids = jax.lax.broadcasted_iota(jnp.int32, (row_blk, LANES), 0)
            lane_ids = jax.lax.broadcasted_iota(jnp.int32, (row_blk, LANES), 1)
            accumulate(row_ids * LANES + lane_ids < elems_left)

    @pl.when(i == steps - 1)
    def _():
        # One cross-sublane fold + six 1-row writes per split (not per step).
        out_ref[...] = jnp.zeros_like(out_ref)
        for k in range(6):
            out_ref[k:k + 1, :] = jnp.sum(acc_ref[k * sub:(k + 1) * sub, :],
                                          axis=0, keepdims=True)


def dynamic_cost_sensitive_loss(logits, labels, total_class_counts):
    """total_class_counts: concrete (neg_count, pos_count), like the PyTorch module."""
    orig_n = logits.size

    # Free reshapes; labels stay in their native dtype (int8/bool/f32 all fine).
    flat_logits = logits.reshape(-1)
    flat_labels = labels.reshape(-1)

    # Lane alignment only when the element count isn't a multiple of 128.  The
    # pad value is irrelevant (padded slots are excluded by the element-level
    # tail mask), so no -1 sentinel / label-dtype games.
    # TODO(synk): for huge non-128-aligned inputs this pad is still one HBM
    # copy; producers should hand in 128-aligned flats to avoid it entirely.
    rem = orig_n % LANES
    if rem:
        pad = LANES - rem
        flat_logits = jnp.pad(flat_logits, (0, pad))
        flat_labels = jnp.pad(flat_labels, (0, pad))

    n_rows = flat_logits.size // LANES
    lg = flat_logits.reshape(n_rows, LANES)
    lb = flat_labels.reshape(n_rows, LANES)

    num_splits = _num_splits()
    row_blk = n_rows if n_rows <= MAX_ROW_BLK else MAX_ROW_BLK
    num_blocks = -(-n_rows // row_blk)
    steps = -(-num_blocks // num_splits)
    exact = (num_splits * steps * row_blk * LANES) == orig_n
    sub = 8 if row_blk % 8 == 0 else 1      # tiny-input fallback only

    def in_index(c, i):
        # Clamp logical overrun (num_splits*steps > num_blocks); overrun blocks
        # are fully masked in-kernel, so re-reading the last block is harmless.
        blk = jnp.minimum(c * steps + i, num_blocks - 1)
        return (blk, 0)

    kernel = functools.partial(_partial_sums_kernel, row_blk=row_blk,
                               steps=steps, n_valid=orig_n, sub=sub,
                               exact=exact)

    sums = pl.pallas_call(
        kernel,
        out_shape=jax.ShapeDtypeStruct((num_splits, 8, LANES), jnp.float32),
        grid_spec=pltpu.PrefetchScalarGridSpec(
            num_scalar_prefetch=0,
            grid=(num_splits, steps),
            in_specs=[
                pl.BlockSpec((row_blk, LANES), in_index),
                pl.BlockSpec((row_blk, LANES), in_index),
            ],
            out_specs=pl.BlockSpec((None, 8, LANES), lambda c, i: (c, 0, 0)),
            scratch_shapes=[pltpu.VMEM((6 * sub, LANES), jnp.float32)],
        ),
        compiler_params=pltpu.CompilerParams(
            dimension_semantics=("parallel", "arbitrary"),
            vmem_limit_bytes=VMEM_LIMIT_BYTES),
    )(lg, lb)

    # Tiny final reductions + scalar weight algebra (plain-JAX glue).
    # Rows: 0 tp, 1 fp, 2 #pos, 3 #neg, 4 sum(BCE|y==1), 5 sum(BCE|y==0).
    # Note: per-lane f32 accumulators stay integer-exact for counts < 2^24 per
    # lane per split (fine for inputs up to ~4e9 elements).
    total = jnp.sum(sums, axis=(0, 2))            # (8,)
    tp, fp = total[0], total[1]
    batch_pos, batch_neg = total[2], total[3]
    bce_pos_sum, bce_neg_sum = total[4], total[5]
    tn = batch_neg - fp
    fn = batch_pos - tp

    fpr = fp / (fp + tn + EPS)
    fnr = fn / (fn + tp + EPS)
    harmonic_fpr_fnr = 2.0 * (fpr * fnr) / (fpr + fnr + EPS)

    batch_total = batch_pos + batch_neg + EPS
    batch_pos_weight = batch_neg / batch_total
    batch_neg_weight = batch_pos / batch_total

    # TODO(synk): total_class_counts must be concrete Python numbers (matches
    # the PyTorch module's host-side usage); traced counts would need jnp math.
    total_neg = float(total_class_counts[0])
    total_pos = float(total_class_counts[1])
    total_total = total_pos + total_neg + EPS
    total_pos_weight = total_neg / total_total
    total_neg_weight = total_pos / total_total

    pos_weight = jnp.sqrt((batch_pos_weight ** 2 + total_pos_weight ** 2) / 2.0)
    neg_weight = jnp.sqrt((batch_neg_weight ** 2 + total_neg_weight ** 2) / 2.0)
    misclass_cost = pos_weight + harmonic_fpr_fnr

    # mean( misclass_cost * where(y==1, pos_w, neg_w) * BCE ); labels that are
    # neither 0 nor 1 are excluded from every sum (strictly binary assumed).
    weighted_sum = misclass_cost * (pos_weight * bce_pos_sum +
                                    neg_weight * bce_neg_sum)
    return weighted_sum / orig_n


def _reference_jax(logits, labels, total_class_counts):
    # Pure-JAX replica of the PyTorch forward, for a sanity check.
    x = logits.astype(jnp.float32)
    y = labels.astype(jnp.float32)
    probs = jax.nn.sigmoid(x)
    preds = (probs >= 0.5).astype(jnp.float32)
    tp = jnp.sum(((y == 1) & (preds == 1)).astype(jnp.float32))
    tn = jnp.sum(((y == 0) & (preds == 0)).astype(jnp.float32))
    fp = jnp.sum(((y == 0) & (preds == 1)).astype(jnp.float32))
    fn = jnp.sum(((y == 1) & (preds == 0)).astype(jnp.float32))
    fpr = fp / (fp + tn + EPS)
    fnr = fn / (fn + tp + EPS)
    harm = 2 * (fpr * fnr) / (fpr + fnr + EPS)
    bp = jnp.sum((y == 1).astype(jnp.float32))
    bn = jnp.sum((y == 0).astype(jnp.float32))
    bt = bp + bn + EPS
    bpw, bnw = bn / bt, bp / bt
    tneg, tpos = float(total_class_counts[0]), float(total_class_counts[1])
    tt = tpos + tneg + EPS
    tpw, tnw = tneg / tt, tpos / tt
    pw = jnp.sqrt((bpw ** 2 + tpw ** 2) / 2)
    nw = jnp.sqrt((bnw ** 2 + tnw ** 2) / 2)
    mc = pw + harm
    bce = jnp.maximum(x, 0.0) - x * y + jnp.log1p(jnp.exp(-jnp.abs(x)))
    w = jnp.where(y == 1, pw, nw)
    return jnp.mean(mc * w * bce)


if __name__ == "__main__":
    key = jax.random.PRNGKey(0)
    k1, k2 = jax.random.split(key)
    # Small shapes consistent with a dense binary-classification head.
    logits = jax.random.normal(k1, (2, 4, 16, 16), dtype=jnp.float32)
    labels = (jax.random.uniform(k2, (2, 4, 16, 16)) > 0.7).astype(jnp.float32)
    total_class_counts = (1000.0, 300.0)  # (neg_count, pos_count)

    loss = dynamic_cost_sensitive_loss(logits, labels, total_class_counts)
    loss = jax.block_until_ready(loss)

    ref = _reference_jax(logits, labels, total_class_counts)
    assert jnp.allclose(loss, ref, rtol=1e-5, atol=1e-6), (loss, ref)
    print("KERNEL_OK")
</pallas_src>

<mosaic_0001>
module attributes {stable_mosaic.version = 11 : i64} {
  func.func @_partial_sums_kernel(%arg0: i32, %arg1: i32, %arg2: memref<16x128xf32, #tpu.memory_space<vmem>>, %arg3: memref<16x128xf32, #tpu.memory_space<vmem>>, %arg4: memref<1x8x128xf32, #tpu.memory_space<vmem>>, %arg5: memref<48x128xf32, #tpu.memory_space<vmem>>) attributes {dimension_semantics = [#tpu.dimension_semantics<parallel>, #tpu.dimension_semantics<arbitrary>], iteration_bounds = array<i64: 1, 1>, scalar_prefetch = 0 : i64, scratch_operands = 1 : i64, tpu.core_type = #tpu.core_type<tc>, window_params = [{transform_indices = @transform_0, window_bounds = array<i64: 16, 128>}, {transform_indices = @transform_1, window_bounds = array<i64: 16, 128>}, {transform_indices = @transform_2, window_bounds = array<i64: 1, 8, 128>}]} {
    %c0_i32 = arith.constant 0 : i32
    %0 = arith.cmpi eq, %arg1, %c0_i32 : i32
    %1 = arith.extui %0 : i1 to i32
    %c0_i32_0 = arith.constant 0 : i32
    %2 = arith.cmpi ne, %1, %c0_i32_0 : i32
    scf.if %2 {
      %cst_39 = arith.constant 0.000000e+00 : f32
      %65 = vector.broadcast %cst_39 : f32 to vector<48x128xf32>
      %c0_40 = arith.constant 0 : index
      %c0_41 = arith.constant 0 : index
      %66 = vector.load %arg5[%c0_40, %c0_41] : memref<48x128xf32, #tpu.memory_space<vmem>>, vector<48x128xf32>
      tpu.vector_store %arg5[%c0_40, %c0_41], %65 {strides = array<i32>} : memref<48x128xf32, #tpu.memory_space<vmem>>, vector<48x128xf32>,
    } else {
    }
    %c0 = arith.constant 0 : index
    %c0_1 = arith.constant 0 : index
    %3 = vector.load %arg2[%c0, %c0_1] : memref<16x128xf32, #tpu.memory_space<vmem>>, vector<16x128xf32>
    %c0_2 = arith.constant 0 : index
    %c0_3 = arith.constant 0 : index
    %4 = vector.load %arg3[%c0_2, %c0_3] : memref<16x128xf32, #tpu.memory_space<vmem>>, vector<16x128xf32>
    %cst = arith.constant 0.000000e+00 : f32
    %5 = vector.broadcast %cst : f32 to vector<16x128xf32>
    %6 = arith.cmpf oge, %3, %5 : vector<16x128xf32>
    %cst_4 = arith.constant 1.000000e+00 : f32
    %7 = vector.broadcast %cst_4 : f32 to vector<16x128xf32>
    %8 = arith.cmpf oeq, %4, %7 : vector<16x128xf32>
    %cst_5 = arith.constant 0.000000e+00 : f32
    %9 = vector.broadcast %cst_5 : f32 to vector<16x128xf32>
    %10 = arith.cmpf oeq, %4, %9 : vector<16x128xf32>
    %11 = arith.extui %8 : vector<16x128xi1> to vector<16x128xi32>
    %12 = arith.sitofp %11 : vector<16x128xi32> to vector<16x128xf32>
    %13 = arith.extui %10 : vector<16x128xi1> to vector<16x128xi32>
    %14 = arith.sitofp %13 : vector<16x128xi32> to vector<16x128xf32>
    %cst_6 = arith.constant 0.000000e+00 : f32
    %15 = vector.broadcast %cst_6 : f32 to vector<16x128xf32>
    %16 = arith.maximumf %3, %15 : vector<16x128xf32>
    %17 = math.absf %3 : vector<16x128xf32>
    %cst_7 = arith.constant 0.000000e+00 : f32
    %18 = vector.broadcast %cst_7 : f32 to vector<16x128xf32>
    %19 = arith.subf %18, %17 : vector<16x128xf32>
    %20 = math.exp %19 : vector<16x128xf32>
    %21 = math.log1p %20 : vector<16x128xf32>
    %22 = arith.addf %16, %21 : vector<16x128xf32>
    %c0_8 = arith.constant 0 : index
    %c0_9 = arith.constant 0 : index
    %23 = vector.load %arg5[%c0_8, %c0_9] : memref<48x128xf32, #tpu.memory_space<vmem>>, vector<8x128xf32>
    %cst_10 = arith.constant 0.000000e+00 : f32
    %24 = vector.broadcast %cst_10 : f32 to vector<16x128xf32>
    %25 = arith.select %6, %12, %24 : vector<16x128xi1>, vector<16x128xf32>
    %26 = vector.shape_cast %25 : vector<16x128xf32> to vector<2x8x128xf32>
    %cst_11 = arith.constant dense<0.000000e+00> : vector<8x128xf32>
    %27 = vector.multi_reduction <add>, %26, %cst_11 [0] : vector<2x8x128xf32> to vector<8x128xf32>
    %28 = arith.addf %23, %27 : vector<8x128xf32>
    %c0_12 = arith.constant 0 : index
    %c0_13 = arith.constant 0 : index
    %29 = vector.load %arg5[%c0_12, %c0_13] : memref<48x128xf32, #tpu.memory_space<vmem>>, vector<8x128xf32>
    tpu.vector_store %arg5[%c0_12, %c0_13], %28 {strides = array<i32>} : memref<48x128xf32, #tpu.memory_space<vmem>>, vector<8x128xf32>,
    %c8 = arith.constant 8 : index
    %c0_14 = arith.constant 0 : index
    %30 = vector.load %arg5[%c8, %c0_14] : memref<48x128xf32, #tpu.memory_space<vmem>>, vector<8x128xf32>
    %cst_15 = arith.constant 0.000000e+00 : f32
    %31 = vector.broadcast %cst_15 : f32 to vector<16x128xf32>
    %32 = arith.select %6, %14, %31 : vector<16x128xi1>, vector<16x128xf32>
    %33 = vector.shape_cast %32 : vector<16x128xf32> to vector<2x8x128xf32>
    %cst_16 = arith.constant dense<0.000000e+00> : vector<8x128xf32>
    %34 = vector.multi_reduction <add>, %33, %cst_16 [0] : vector<2x8x128xf32> to vector<8x128xf32>
    %35 = arith.addf %30, %34 : vector<8x128xf32>
    %c8_17 = arith.constant 8 : index
    %c0_18 = arith.constant 0 : index
    %36 = vector.load %arg5[%c8_17, %c0_18] : memref<48x128xf32, #tpu.memory_space<vmem>>, vector<8x128xf32>
    tpu.vector_store %arg5[%c8_17, %c0_18], %35 {strides = array<i32>} : memref<48x128xf32, #tpu.memory_space<vmem>>, vector<8x128xf32>,
    %c16 = arith.constant 16 : index
    %c0_19 = arith.constant 0 : index
    %37 = vector.load %arg5[%c16, %c0_19] : memref<48x128xf32, #tpu.memory_space<vmem>>, vector<8x128xf32>
    %38 = vector.shape_cast %12 : vector<16x128xf32> to vector<2x8x128xf32>
    %cst_20 = arith.constant dense<0.000000e+00> : vector<8x128xf32>
    %39 = vector.multi_reduction <add>, %38, %cst_20 [0] : vector<2x8x128xf32> to vector<8x128xf32>
    %40 = arith.addf %37, %39 : vector<8x128xf32>
    %c16_21 = arith.constant 16 : index
    %c0_22 = arith.constant 0 : index
    %41 = vector.load %arg5[%c16_21, %c0_22] : memref<48x128xf32, #tpu.memory_space<vmem>>, vector<8x128xf32>
    tpu.vector_store %arg5[%c16_21, %c0_22], %40 {strides = array<i32>} : memref<48x128xf32, #tpu.memory_space<vmem>>, vector<8x128xf32>,
    %c24 = arith.constant 24 : index
    %c0_23 = arith.constant 0 : index
    %42 = vector.load %arg5[%c24, %c0_23] : memref<48x128xf32, #tpu.memory_space<vmem>>, vector<8x128xf32>
    %43 = vector.shape_cast %14 : vector<16x128xf32> to vector<2x8x128xf32>
    %cst_24 = arith.constant dense<0.000000e+00> : vector<8x128xf32>
    %44 = vector.multi_reduction <add>, %43, %cst_24 [0] : vector<2x8x128xf32> to vector<8x128xf32>
    %45 = arith.addf %42, %44 : vector<8x128xf32>
    %c24_25 = arith.constant 24 : index
    %c0_26 = arith.constant 0 : index
    %46 = vector.load %arg5[%c24_25, %c0_26] : memref<48x128xf32, #tpu.memory_space<vmem>>, vector<8x128xf32>
    tpu.vector_store %arg5[%c24_25, %c0_26], %45 {strides = array<i32>} : memref<48x128xf32, #tpu.memory_space<vmem>>, vector<8x128xf32>,
    %c32 = arith.constant 32 : index
    %c0_27 = arith.constant 0 : index
    %47 = vector.load %arg5[%c32, %c0_27] : memref<48x128xf32, #tpu.memory_space<vmem>>, vector<8x128xf32>
    %48 = arith.subf %22, %3 : vector<16x128xf32>
    %cst_28 = arith.constant 0.000000e+00 : f32
    %49 = vector.broadcast %cst_28 : f32 to vector<16x128xf32>
    %50 = arith.select %8, %48, %49 : vector<16x128xi1>, vector<16x128xf32>
    %51 = vector.shape_cast %50 : vector<16x128xf32> to vector<2x8x128xf32>
    %cst_29 = arith.constant dense<0.000000e+00> : vector<8x128xf32>
    %52 = vector.multi_reduction <add>, %51, %cst_29 [0] : vector<2x8x128xf32> to vector<8x128xf32>
    %53 = arith.addf %47, %52 : vector<8x128xf32>
    %c32_30 = arith.constant 32 : index
    %c0_31 = arith.constant 0 : index
    %54 = vector.load %arg5[%c32_30, %c0_31] : memref<48x128xf32, #tpu.memory_space<vmem>>, vector<8x128xf32>
    tpu.vector_store %arg5[%c32_30, %c0_31], %53 {strides = array<i32>} : memref<48x128xf32, #tpu.memory_space<vmem>>, vector<8x128xf32>,
    %c40 = arith.constant 40 : index
    %c0_32 = arith.constant 0 : index
    %55 = vector.load %arg5[%c40, %c0_32] : memref<48x128xf32, #tpu.memory_space<vmem>>, vector<8x128xf32>
    %cst_33 = arith.constant 0.000000e+00 : f32
    %56 = vector.broadcast %cst_33 : f32 to vector<16x128xf32>
    %57 = arith.select %10, %22, %56 : vector<16x128xi1>, vector<16x128xf32>
    %58 = vector.shape_cast %57 : vector<16x128xf32> to vector<2x8x128xf32>
    %cst_34 = arith.constant dense<0.000000e+00> : vector<8x128xf32>
    %59 = vector.multi_reduction <add>, %58, %cst_34 [0] : vector<2x8x128xf32> to vector<8x128xf32>
    %60 = arith.addf %55, %59 : vector<8x128xf32>
    %c40_35 = arith.constant 40 : index
    %c0_36 = arith.constant 0 : index
    %61 = vector.load %arg5[%c40_35, %c0_36] : memref<48x128xf32, #tpu.memory_space<vmem>>, vector<8x128xf32>
    tpu.vector_store %arg5[%c40_35, %c0_36], %60 {strides = array<i32>} : memref<48x128xf32, #tpu.memory_space<vmem>>, vector<8x128xf32>,
    %c0_i32_37 = arith.constant 0 : i32
    %62 = arith.cmpi eq, %arg1, %c0_i32_37 : i32
    %63 = arith.extui %62 : i1 to i32
    %c0_i32_38 = arith.constant 0 : i32
    %64 = arith.cmpi ne, %63, %c0_i32_38 : i32
    scf.if %64 {
      %cst_39 = arith.constant 0.000000e+00 : f32
      %65 = vector.broadcast %cst_39 : f32 to vector<8x128xf32>
      %c0_40 = arith.constant 0 : index
      %c0_41 = arith.constant 0 : index
      %c0_42 = arith.constant 0 : index
      %66 = vector.load %arg4[%c0_40, %c0_41, %c0_42] : memref<1x8x128xf32, #tpu.memory_space<vmem>>, vector<1x8x128xf32>
      %67 = vector.shape_cast %66 : vector<1x8x128xf32> to vector<8x128xf32>
      %68 = vector.shape_cast %65 : vector<8x128xf32> to vector<1x8x128xf32>
      tpu.vector_store %arg4[%c0_40, %c0_41, %c0_42], %68 {strides = array<i32>} : memref<1x8x128xf32, #tpu.memory_space<vmem>>, vector<1x8x128xf32>,
      %c0_43 = arith.constant 0 : index
      %c0_44 = arith.constant 0 : index
      %69 = vector.load %arg5[%c0_43, %c0_44] : memref<48x128xf32, #tpu.memory_space<vmem>>, vector<8x128xf32>
      %cst_45 = arith.constant dense<0.000000e+00> : vector<128xf32>
      %70 = vector.multi_reduction <add>, %69, %cst_45 [0] : vector<8x128xf32> to vector<128xf32>
      %71 = vector.shape_cast %70 : vector<128xf32> to vector<1x128xf32>
      %c0_46 = arith.constant 0 : index
      %c0_47 = arith.constant 0 : index
      %c0_48 = arith.constant 0 : index
      %72 = vector.load %arg4[%c0_46, %c0_47, %c0_48] : memref<1x8x128xf32, #tpu.memory_space<vmem>>, vector<1x1x128xf32>
      %73 = vector.shape_cast %72 : vector<1x1x128xf32> to vector<1x128xf32>
      %74 = vector.shape_cast %71 : vector<1x128xf32> to vector<1x1x128xf32>
      tpu.vector_store %arg4[%c0_46, %c0_47, %c0_48], %74 {strides = array<i32>} : memref<1x8x128xf32, #tpu.memory_space<vmem>>, vector<1x1x128xf32>,
      %c8_49 = arith.constant 8 : index
      %c0_50 = arith.constant 0 : index
      %75 = vector.load %arg5[%c8_49, %c0_50] : memref<48x128xf32, #tpu.memory_space<vmem>>, vector<8x128xf32>
      %cst_51 = arith.constant dense<0.000000e+00> : vector<128xf32>
      %76 = vector.multi_reduction <add>, %75, %cst_51 [0] : vector<8x128xf32> to vector<128xf32>
      %77 = vector.shape_cast %76 : vector<128xf32> to vector<1x128xf32>
      %c0_52 = arith.constant 0 : index
      %c1 = arith.constant 1 : index
      %c0_53 = arith.constant 0 : index
      %78 = vector.load %arg4[%c0_52, %c1, %c0_53] : memref<1x8x128xf32, #tpu.memory_space<vmem>>, vector<1x1x128xf32>
      %79 = vector.shape_cast %78 : vector<1x1x128xf32> to vector<1x128xf32>
      %80 = vector.shape_cast %77 : vector<1x128xf32> to vector<1x1x128xf32>
      tpu.vector_store %arg4[%c0_52, %c1, %c0_53], %80 {strides = array<i32>} : memref<1x8x128xf32, #tpu.memory_space<vmem>>, vector<1x1x128xf32>,
      %c16_54 = arith.constant 16 : index
      %c0_55 = arith.constant 0 : index
      %81 = vector.load %arg5[%c16_54, %c0_55] : memref<48x128xf32, #tpu.memory_space<vmem>>, vector<8x128xf32>
      %cst_56 = arith.constant dense<0.000000e+00> : vector<128xf32>
      %82 = vector.multi_reduction <add>, %81, %cst_56 [0] : vector<8x128xf32> to vector<128xf32>
      %83 = vector.shape_cast %82 : vector<128xf32> to vector<1x128xf32>
      %c0_57 = arith.constant 0 : index
      %c2 = arith.constant 2 : index
      %c0_58 = arith.constant 0 : index
      %84 = vector.load %arg4[%c0_57, %c2, %c0_58] : memref<1x8x128xf32, #tpu.memory_space<vmem>>, vector<1x1x128xf32>
      %85 = vector.shape_cast %84 : vector<1x1x128xf32> to vector<1x128xf32>
      %86 = vector.shape_cast %83 : vector<1x128xf32> to vector<1x1x128xf32>
      tpu.vector_store %arg4[%c0_57, %c2, %c0_58], %86 {strides = array<i32>} : memref<1x8x128xf32, #tpu.memory_space<vmem>>, vector<1x1x128xf32>,
      %c24_59 = arith.constant 24 : index
      %c0_60 = arith.constant 0 : index
      %87 = vector.load %arg5[%c24_59, %c0_60] : memref<48x128xf32, #tpu.memory_space<vmem>>, vector<8x128xf32>
      %cst_61 = arith.constant dense<0.000000e+00> : vector<128xf32>
      %88 = vector.multi_reduction <add>, %87, %cst_61 [0] : vector<8x128xf32> to vector<128xf32>
      %89 = vector.shape_cast %88 : vector<128xf32> to vector<1x128xf32>
      %c0_62 = arith.constant 0 : index
      %c3 = arith.constant 3 : index
      %c0_63 = arith.constant 0 : index
      %90 = vector.load %arg4[%c0_62, %c3, %c0_63] : memref<1x8x128xf32, #tpu.memory_space<vmem>>, vector<1x1x128xf32>
      %91 = vector.shape_cast %90 : vector<1x1x128xf32> to vector<1x128xf32>
      %92 = vector.shape_cast %89 : vector<1x128xf32> to vector<1x1x128xf32>
      tpu.vector_store %arg4[%c0_62, %c3, %c0_63], %92 {strides = array<i32>} : memref<1x8x128xf32, #tpu.memory_space<vmem>>, vector<1x1x128xf32>,
      %c32_64 = arith.constant 32 : index
      %c0_65 = arith.constant 0 : index
      %93 = vector.load %arg5[%c32_64, %c0_65] : memref<48x128xf32, #tpu.memory_space<vmem>>, vector<8x128xf32>
      %cst_66 = arith.constant dense<0.000000e+00> : vector<128xf32>
      %94 = vector.multi_reduction <add>, %93, %cst_66 [0] : vector<8x128xf32> to vector<128xf32>
      %95 = vector.shape_cast %94 : vector<128xf32> to vector<1x128xf32>
      %c0_67 = arith.constant 0 : index
      %c4 = arith.constant 4 : index
      %c0_68 = arith.constant 0 : index
      %96 = vector.load %arg4[%c0_67, %c4, %c0_68] : memref<1x8x128xf32, #tpu.memory_space<vmem>>, vector<1x1x128xf32>
      %97 = vector.shape_cast %96 : vector<1x1x128xf32> to vector<1x128xf32>
      %98 = vector.shape_cast %95 : vector<1x128xf32> to vector<1x1x128xf32>
      tpu.vector_store %arg4[%c0_67, %c4, %c0_68], %98 {strides = array<i32>} : memref<1x8x128xf32, #tpu.memory_space<vmem>>, vector<1x1x128xf32>,
      %c40_69 = arith.constant 40 : index
      %c0_70 = arith.constant 0 : index
      %99 = vector.load %arg5[%c40_69, %c0_70] : memref<48x128xf32, #tpu.memory_space<vmem>>, vector<8x128xf32>
      %cst_71 = arith.constant dense<0.000000e+00> : vector<128xf32>
      %100 = vector.multi_reduction <add>, %99, %cst_71 [0] : vector<8x128xf32> to vector<128xf32>
      %101 = vector.shape_cast %100 : vector<128xf32> to vector<1x128xf32>
      %c0_72 = arith.constant 0 : index
      %c5 = arith.constant 5 : index
      %c0_73 = arith.constant 0 : index
      %102 = vector.load %arg4[%c0_72, %c5, %c0_73] : memref<1x8x128xf32, #tpu.memory_space<vmem>>, vector<1x1x128xf32>
      %103 = vector.shape_cast %102 : vector<1x1x128xf32> to vector<1x128xf32>
      %104 = vector.shape_cast %101 : vector<1x128xf32> to vector<1x1x128xf32>
      tpu.vector_store %arg4[%c0_72, %c5, %c0_73], %104 {strides = array<i32>} : memref<1x8x128xf32, #tpu.memory_space<vmem>>, vector<1x1x128xf32>,
    } else {
    }
    return
  }
  func.func @transform_0(%arg0: i32, %arg1: i32) -> (i32, i32) {
    %c1_i32 = arith.constant 1 : i32
    %0 = arith.muli %arg0, %c1_i32 : i32
    %1 = arith.addi %0, %arg1 : i32
    %c0_i32 = arith.constant 0 : i32
    %2 = arith.minsi %1, %c0_i32 : i32
    %c0_i32_0 = arith.constant 0 : i32
    %c0_i32_1 = arith.constant 0 : i32
    return %2, %c0_i32_0 : i32, i32
  }
  func.func @transform_1(%arg0: i32, %arg1: i32) -> (i32, i32) {
    %c1_i32 = arith.constant 1 : i32
    %0 = arith.muli %arg0, %c1_i32 : i32
    %1 = arith.addi %0, %arg1 : i32
    %c0_i32 = arith.constant 0 : i32
    %2 = arith.minsi %1, %c0_i32 : i32
    %c0_i32_0 = arith.constant 0 : i32
    %c0_i32_1 = arith.constant 0 : i32
    return %2, %c0_i32_0 : i32, i32
  }
  func.func @transform_2(%arg0: i32, %arg1: i32) -> (i32, i32, i32) {
    %c0_i32 = arith.constant 0 : i32
    %c0_i32_0 = arith.constant 0 : i32
    %c0_i32_1 = arith.constant 0 : i32
    return %arg0, %c0_i32, %c0_i32_0 : i32, i32, i32
  }
}

</mosaic_0001>

<llo_original>
// kernel: tpu_custom_call.1
$region0: #{tpu_custom_call.1}
  #allocation0 [shape = 'u32[]', space=smem, size = 0x4, offset = 0x4, fixed_abs, tag = 'smem constant byte address 0x4 - core index']
  #allocation1 [shape = 'u32[144,128]{1,0:T(1,128)}', space=vmem, size = 0x12000, scoped, tag = 'internal scratch']
  #allocation2 [shape = 'f32[48,128]{1,0:T(8,128)}', space=vmem, size = 0x6000, scoped, tag = 'scratch operand']
  %s0 = inlined_call_operand.hbm [shape: f32[16,128], index: 0, kind: input, shape index: {}]
  %s1 = inlined_call_operand.hbm [shape: f32[16,128], index: 1, kind: input, shape index: {}]
  %s2 = inlined_call_operand.hbm [shape: f32[1,8,128], index: 2, kind: output, shape index: {}]
  %s3 = sld [smem:[#allocation0]]
  $region34: #{tpu_custom_call.1} parent=0
    _
  %s5 = ssub.s32 1, %s3
  %s6 = scalar_select 0, %s5, %s3
  $region1: #{tpu_custom_call.1} parent=0
    #allocation3 [shape = 'u8[8192]{0}', space=vmem, size = 0x2000, scoped, tag = 'input window, operand 0, single buffered']
    #allocation4 [shape = 's32[1]{0}', space=sflag, size = 0x4, scoped, tag = 'scoped memory for tpu_custom_call.1']
    #allocation5 [shape = 's32[1]{0}', space=sflag, size = 0x4, scoped, tag = 'scoped memory for tpu_custom_call.1']
    #allocation6 [shape = 'u8[8192]{0}', space=vmem, size = 0x2000, scoped, tag = 'input window, operand 1, single buffered']
    #allocation7 [shape = 's32[1]{0}', space=sflag, size = 0x4, scoped, tag = 'scoped memory for tpu_custom_call.1']
    #allocation8 [shape = 'u8[4096]{0}', space=vmem, size = 0x1000, scoped, tag = 'output window, operand 0, single buffered']
    %7 = vsyncpa [#allocation4], 0
    %8 = vsyncpa [#allocation7], 0
    %9 = vsyncpa [#allocation5], 0
    // Predicated region
    $region2: #{tpu_custom_call.1} parent=1 // pred_check
      _
    $region3: #{tpu_custom_call.1} parent=1 // pred_check_branch
      %11 = sbr.rel (0) target = $region5
    $region4: #{tpu_custom_call.1} parent=1 // pred_region
      %s12 = sadd.s32 0, 0
      %p13 = scmp.lt.s32.totalorder %s12, 0
      %s14 = scalar_select %p13, %s12, 0
      %s15 = smul.u32 2, %s14
      %s17 = ssub.s32 256, 256
      %18 = vsyncadd [#allocation4], %s17
      %s19 = smul.addr %s15, 128
      %s20 = scalar_lea.hbm %s0, %s19
      %s21 = sshll.u32 [#allocation3], 4
      %s22 = int_to_ptr.vmem [resolvable:$true] %s21
      %27 = dma.hbm_to_vmem [thread:$0]  %s20, 256, %s22, [#allocation4], 128, 128, 8
    $region5: #{tpu_custom_call.1} parent=1 // pred_fallthru
      _
    // Predicated region
    $region6: #{tpu_custom_call.1} parent=1 // pred_check
      _
    $region7: #{tpu_custom_call.1} parent=1 // pred_check_branch
      %29 = sbr.rel (0) target = $region9
    $region8: #{tpu_custom_call.1} parent=1 // pred_region
      %s30 = sadd.s32 0, 0
      %p31 = scmp.lt.s32.totalorder %s30, 0
      %s32 = scalar_select %p31, %s30, 0
      %s33 = smul.u32 2, %s32
      %s35 = ssub.s32 256, 256
      %36 = vsyncadd [#allocation7], %s35
      %s37 = smul.addr %s33, 128
      %s38 = scalar_lea.hbm %s1, %s37
      %s39 = sshll.u32 [#allocation6], 4
      %s40 = int_to_ptr.vmem [resolvable:$true] %s39
      %45 = dma.hbm_to_vmem [thread:$0]  %s38, 256, %s40, [#allocation7], 128, 128, 8
    $region9: #{tpu_custom_call.1} parent=1 // pred_fallthru
      _
    // Predicated region
    $region10: #{tpu_custom_call.1} parent=1 // pred_check
      _
    $region11: #{tpu_custom_call.1} parent=1 // pred_check_branch
      %47 = sbr.rel (0) target = $region13
    $region12: #{tpu_custom_call.1} parent=1 // pred_region
      %48 = dma.done [#allocation4], 256
    $region13: #{tpu_custom_call.1} parent=1 // pred_fallthru
      _
    // Predicated region
    $region14: #{tpu_custom_call.1} parent=1 // pred_check
      _
    $region15: #{tpu_custom_call.1} parent=1 // pred_check_branch
      %50 = sbr.rel (0) target = $region17
    $region16: #{tpu_custom_call.1} parent=1 // pred_region
      %51 = dma.done [#allocation7], 256
    $region17: #{tpu_custom_call.1} parent=1 // pred_fallthru
      _
    %s52 = sadd.s32 0, 0
    %p53 = scmp.lt.s32.totalorder %s52, 0
    %s54 = scalar_select %p53, %s52, 0
    %s55 = smul.u32 2, %s54
    %s56 = sadd.s32 0, 0
    %p57 = scmp.lt.s32.totalorder %s56, 0
    %s58 = scalar_select %p57, %s56, 0
    %s59 = smul.u32 2, %s58
    %p60 = scmp.eq.s32.totalorder 0, 0
    // Predicated region
    $region18: #{tpu_custom_call.1} parent=1 // pred_check
      %p61 = pneg %p60
    $region19: #{tpu_custom_call.1} parent=1 // pred_check_branch
      %63 = sbr.rel (%p61) target = $region21
    $region20: #{tpu_custom_call.1} parent=1 // pred_region
      %64 = vst [vmem:[#allocation2] sm:$0xff] 0.0
      %65 = vst [vmem:[#allocation2 + $0x8] sm:$0xff] 0.0
      %66 = vst [vmem:[#allocation2 + $0x10] sm:$0xff] 0.0
      %67 = vst [vmem:[#allocation2 + $0x18] sm:$0xff] 0.0
      %68 = vst [vmem:[#allocation2 + $0x20] sm:$0xff] 0.0
      %69 = vst [vmem:[#allocation2 + $0x28] sm:$0xff] 0.0
    $region21: #{tpu_custom_call.1} parent=1 // pred_fallthru
      _
    %v70 = vld [vmem:[#allocation3] sm:$0xff]
    %v71 = vld [vmem:[#allocation3 + $0x8] sm:$0xff]
    %v72 = vld [vmem:[#allocation6] sm:$0xff]
    %v73 = vld [vmem:[#allocation6 + $0x8] sm:$0xff]
    %vm74 = vcmp.ge.f32.partialorder %v70, 0.0
    %vm75 = vcmp.ge.f32.partialorder %v71, 0.0
    %vm76 = vcmp.eq.f32.partialorder %v72, 1.0
    %vm77 = vcmp.eq.f32.partialorder %v73, 1.0
    %vm78 = vcmp.eq.f32.partialorder %v72, 0.0
    %vm79 = vcmp.eq.f32.partialorder %v73, 0.0
    %v80 = vsel %vm76, 1, 0
    %v81 = vsel %vm77, 1, 0
    %v82 = vcvt.s32.f32 %v80
    %v83 = vcvt.s32.f32 %v81
    %v84 = vsel %vm78, 1, 0
    %v85 = vsel %vm79, 1, 0
    %v86 = vcvt.s32.f32 %v84
    %v87 = vcvt.s32.f32 %v85
    %v88 = vmax.f32 %v70, 0.0
    %v89 = vmax.f32 %v71, 0.0
    %v90 = vand.u32 2147483647, %v70
    %v91 = vand.u32 2147483647, %v71
    %v92 = vsub.f32 0.0, %v90
    %v93 = vsub.f32 0.0, %v91
    %v94 = vmul.f32 %v92, 1.442695
    %v95 = vpow.pop %v94
    %v96 = vmul.f32 %v93, 1.442695
    %v97 = vpow.pop %v96
    %v98 = vadd.f32 %v95, 1.0
    %v99 = vlog2.pop %v98
    %v100 = vmul.f32 %v99, 0.6931472
    %v101 = vmul.f32 -0.5, %v95
    %v102 = vadd.f32 %v101, 1.0
    %v103 = vmul.f32 %v102, %v95
    %v104 = vand.u32 2147483647, %v95
    %vm105 = vcmp.lt.f32.partialorder %v104, 0.0004427343
    %v106 = vsel %vm105, %v103, %v100
    %v107 = vadd.f32 %v97, 1.0
    %v108 = vlog2.pop %v107
    %v109 = vmul.f32 %v108, 0.6931472
    %v110 = vmul.f32 -0.5, %v97
    %v111 = vadd.f32 %v110, 1.0
    %v112 = vmul.f32 %v111, %v97
    %v113 = vand.u32 2147483647, %v97
    %vm114 = vcmp.lt.f32.partialorder %v113, 0.0004427343
    %v115 = vsel %vm114, %v112, %v109
    %v116 = vadd.f32 %v88, %v106
    %v117 = vadd.f32 %v89, %v115
    %v118 = vld [vmem:[#allocation2] sm:$0xff]
    %v119 = vsel %vm74, %v82, 0.0
    %v120 = vsel %vm75, %v83, 0.0
    %v121 = vadd.f32 %v119, %v120
    %v122 = vadd.f32 %v118, %v121
    %123 = vst [vmem:[#allocation2] sm:$0xff] %v122
    %v124 = vld [vmem:[#allocation2 + $0x8] sm:$0xff]
    %v125 = vsel %vm74, %v86, 0.0
    %v126 = vsel %vm75, %v87, 0.0
    %v127 = vadd.f32 %v125, %v126
    %v128 = vadd.f32 %v124, %v127
    %129 = vst [vmem:[#allocation2 + $0x8] sm:$0xff] %v128
    %v130 = vld [vmem:[#allocation2 + $0x10] sm:$0xff]
    %v131 = vadd.f32 %v82, %v83
    %v132 = vadd.f32 %v130, %v131
    %133 = vst [vmem:[#allocation2 + $0x10] sm:$0xff] %v132
    %v134 = vld [vmem:[#allocation2 + $0x18] sm:$0xff]
    %v135 = vadd.f32 %v86, %v87
    %v136 = vadd.f32 %v134, %v135
    %137 = vst [vmem:[#allocation2 + $0x18] sm:$0xff] %v136
    %v138 = vld [vmem:[#allocation2 + $0x20] sm:$0xff]
    %v139 = vsub.f32 %v116, %v70
    %v140 = vsub.f32 %v117, %v71
    %v141 = vsel %vm76, %v139, 0.0
    %v142 = vsel %vm77, %v140, 0.0
    %v143 = vadd.f32 %v141, %v142
    %v144 = vadd.f32 %v138, %v143
    %145 = vst [vmem:[#allocation2 + $0x20] sm:$0xff] %v144
    %v146 = vld [vmem:[#allocation2 + $0x28] sm:$0xff]
    %v147 = vsel %vm78, %v116, 0.0
    %v148 = vsel %vm79, %v117, 0.0
    %v149 = vadd.f32 %v147, %v148
    %v150 = vadd.f32 %v146, %v149
    %151 = vst [vmem:[#allocation2 + $0x28] sm:$0xff] %v150
    // Predicated region
    $region22: #{tpu_custom_call.1} parent=1 // pred_check
      %p152 = pneg %p60
    $region23: #{tpu_custom_call.1} parent=1 // pred_check_branch
      %154 = sbr.rel (%p152) target = $region25
    $region24: #{tpu_custom_call.1} parent=1 // pred_region
      %155 = vst [vmem:[#allocation8] sm:$0xff] 0.0
      %v156 = vld [vmem:[#allocation2] sm:$0xff]
      %v157 = vrot.slane %v156, 4
      %v158 = vadd.f32 %v156, %v157
      %v159 = vrot.slane %v158, 2
      %v160 = vadd.f32 %v158, %v159
      %v161 = vrot.slane %v160, 1
      %v162 = vadd.f32 %v160, %v161
      %163 = vst [vmem:[#allocation8] sm:$0x1] %v162
      %v164 = vld [vmem:[#allocation2 + $0x8] sm:$0xff]
      %v165 = vrot.slane %v164, 4
      %v166 = vadd.f32 %v164, %v165
      %v167 = vrot.slane %v166, 2
      %v168 = vadd.f32 %v166, %v167
      %v169 = vrot.slane %v168, 1
      %v170 = vadd.f32 %v168, %v169
      %171 = vst [vmem:[#allocation8 + $0x1] sm:$0x1] %v170
      %v172 = vld [vmem:[#allocation2 + $0x10] sm:$0xff]
      %v173 = vrot.slane %v172, 4
      %v174 = vadd.f32 %v172, %v173
      %v175 = vrot.slane %v174, 2
      %v176 = vadd.f32 %v174, %v175
      %v177 = vrot.slane %v176, 1
      %v178 = vadd.f32 %v176, %v177
      %179 = vst [vmem:[#allocation8 + $0x2] sm:$0x1] %v178
      %v180 = vld [vmem:[#allocation2 + $0x18] sm:$0xff]
      %v181 = vrot.slane %v180, 4
      %v182 = vadd.f32 %v180, %v181
      %v183 = vrot.slane %v182, 2
      %v184 = vadd.f32 %v182, %v183
      %v185 = vrot.slane %v184, 1
      %v186 = vadd.f32 %v184, %v185
      %187 = vst [vmem:[#allocation8 + $0x3] sm:$0x1] %v186
      %v188 = vld [vmem:[#allocation2 + $0x20] sm:$0xff]
      %v189 = vrot.slane %v188, 4
      %v190 = vadd.f32 %v188, %v189
      %v191 = vrot.slane %v190, 2
      %v192 = vadd.f32 %v190, %v191
      %v193 = vrot.slane %v192, 1
      %v194 = vadd.f32 %v192, %v193
      %195 = vst [vmem:[#allocation8 + $0x4] sm:$0x1] %v194
      %v196 = vld [vmem:[#allocation2 + $0x28] sm:$0xff]
      %v197 = vrot.slane %v196, 4
      %v198 = vadd.f32 %v196, %v197
      %v199 = vrot.slane %v198, 2
      %v200 = vadd.f32 %v198, %v199
      %v201 = vrot.slane %v200, 1
      %v202 = vadd.f32 %v200, %v201
      %203 = vst [vmem:[#allocation8 + $0x5] sm:$0x1] %v202
    $region25: #{tpu_custom_call.1} parent=1 // pred_fallthru
      _
    // Predicated region
    $region26: #{tpu_custom_call.1} parent=1 // pred_check
      _
    $region27: #{tpu_custom_call.1} parent=1 // pred_check_branch
      %205 = sbr.rel (0) target = $region29
    $region28: #{tpu_custom_call.1} parent=1 // pred_region
      %s207 = ssub.s32 128, 128
      %208 = vsyncadd [#allocation5], %s207
      %s210 = sshll.u32 [#allocation8], 4
      %s211 = int_to_ptr.vmem [resolvable:$true] %s210
      %213 = dma.vmem_to_hbm [thread:$0]  %s211, 128, %s2, [#allocation5]
    $region29: #{tpu_custom_call.1} parent=1 // pred_fallthru
      _
    // Predicated region
    $region30: #{tpu_custom_call.1} parent=1 // pred_check
      _
    $region31: #{tpu_custom_call.1} parent=1 // pred_check_branch
      %215 = sbr.rel (0) target = $region33
    $region32: #{tpu_custom_call.1} parent=1 // pred_region
      %216 = dma.done [#allocation5], 128
    $region33: #{tpu_custom_call.1} parent=1 // pred_fallthru
      _
    %217 = vsyncpa [#allocation4], 1
    %218 = vsyncpa [#allocation7], 1
    %219 = vsyncpa [#allocation5], 1

</llo_original>
